<compile_context>
chip_gen: v7x
topology: tpu7x:2x2x1
jax: 0.10.0
libtpu: 0.0.40
codegen_flags: <defaults>
</compile_context>

<pallas_src>
import jax
import jax.numpy as jnp
from jax import lax
from jax.experimental import pallas as pl
from jax.experimental.pallas import tpu as pltpu


# ---------------------------------------------------------------------------
# Shared BCE math (runs on the VPU/EUP inside both kernels).
# ---------------------------------------------------------------------------
def _masked_bce_sum(pred, target, mask_f32):
    """sum(mask * BCE(pred, target)); pred/target are upcast to f32 here."""
    p = pred.astype(jnp.float32)
    t = target.astype(jnp.float32)
    # F.binary_cross_entropy clamps both log terms at -100.
    log_p = jnp.maximum(jnp.log(p), -100.0)
    log_1mp = jnp.maximum(jnp.log(1.0 - p), -100.0)
    bce = -(t * log_p + (1.0 - t) * log_1mp)
    return jnp.sum(bce * mask_f32)          # mask multiply == reference semantics


# ---------------------------------------------------------------------------
# Primary kernel: in-kernel NCHW-direct gather + masked BCE reduction.
# ---------------------------------------------------------------------------
def _make_gather_bce_kernel(BBLK, K):
    nbk = BBLK * K

    def kernel(ind_ref, mask_ref, target_ref, feat_hbm, out_ref, gathered, sem):
        """One grid step = BBLK batch elements.

        ind_ref    : (B, K) int32, SMEM (scalar prefetch) — spatial indices
        mask_ref   : (BBLK, 1, K) f32 VMEM block
        target_ref : (BBLK, C, K) VMEM block (native dtype)
        feat_hbm   : (B, C, HW) HBM-resident ref (NCHW layout, memory_space=pl.ANY)
        out_ref    : (1, 1, 1) f32 VMEM block — per-block masked BCE sum
        gathered   : (BBLK, C, K) VMEM scratch (native dtype, lane axis = K)
        sem        : (1,) DMA semaphore shared by all BBLK*K gather copies
        """
        blk = pl.program_id(0)

        def start_one(j, k):
            gb = blk * BBLK + j                      # global batch index
            idx = ind_ref[gb, k]                     # spatial index in [0, HW)
            pltpu.make_async_copy(
                feat_hbm.at[gb, :, pl.ds(idx, 1)],   # (C, 1) column, HBM stride = HW
                gathered.at[j, :, pl.ds(k, 1)],      # (C, 1) column of the scratch
                sem.at[0],
            ).start()

        # Issue ALL BBLK*K gather DMAs up front so their latencies overlap.
        if nbk <= 64:
            for j in range(BBLK):                    # static unroll (small K*BBLK)
                for k in range(K):
                    start_one(j, k)
        else:
            # TODO(synk): chunk-unrolled issue loop for CenterNet-scale K; uses a
            # dynamic lane offset in the DMA destination (only exercised at large K).
            def body(i, carry):
                j = i // K
                start_one(j, i - j * K)
                return carry
            lax.fori_loop(0, nbk, body, 0, unroll=8)

        # Single bulk drain: DMA semaphores are byte-accounted, so one wait with a
        # descriptor covering the whole scratch waits for every issued copy.
        pltpu.make_async_copy(
            feat_hbm.at[pl.ds(0, BBLK), :, pl.ds(0, K)],   # byte-count proxy only
            gathered,
            sem.at[0],
        ).wait()

        out_ref[...] = _masked_bce_sum(
            gathered[...], target_ref[...], mask_ref[...]).reshape(1, 1, 1)

    return kernel


def _run_gather_bce(feat_bchw, ind_i32, mask_f, target_ck, BBLK, nblk, cost):
    B, C, HW = feat_bchw.shape
    K = ind_i32.shape[1]
    grid_spec = pltpu.PrefetchScalarGridSpec(
        num_scalar_prefetch=1,        # ind lives in SMEM and drives the gather DMAs
        grid=(nblk,),
        in_specs=[
            pl.BlockSpec((BBLK, 1, K), lambda g, ind_r: (g, 0, 0)),   # mask
            pl.BlockSpec((BBLK, C, K), lambda g, ind_r: (g, 0, 0)),   # target
            pl.BlockSpec(memory_space=pl.ANY),                        # feat in HBM
        ],
        out_specs=pl.BlockSpec((1, 1, 1), lambda g, ind_r: (g, 0, 0)),
        scratch_shapes=[
            pltpu.VMEM((BBLK, C, K), feat_bchw.dtype),    # lane-dense gather target
            pltpu.SemaphoreType.DMA((1,)),                # one shared DMA semaphore
        ],
    )
    return pl.pallas_call(
        _make_gather_bce_kernel(BBLK, K),
        out_shape=jax.ShapeDtypeStruct((nblk, 1, 1), jnp.float32),
        grid_spec=grid_spec,
        compiler_params=pltpu.CompilerParams(dimension_semantics=("parallel",)),
        cost_estimate=cost,
    )(ind_i32, mask_f, target_ck, feat_bchw)


# ---------------------------------------------------------------------------
# Fallback kernel (feature gate): identical lane-dense BCE reduction, but the
# gather is done by an XLA last-axis gather that touches the same ~B*K*C bytes.
# Only used if this jax/libtpu rejects the width-1 lane-dim DMA destination.
# ---------------------------------------------------------------------------
def _pregathered_bce_kernel(mask_ref, target_ref, pred_ref, out_ref):
    out_ref[...] = _masked_bce_sum(
        pred_ref[...], target_ref[...], mask_ref[...]).reshape(1, 1, 1)


def _run_pregathered_bce(feat_bchw, ind_i32, mask_f, target_ck, BBLK, nblk, cost):
    B, C, HW = feat_bchw.shape
    K = ind_i32.shape[1]
    idx = jnp.broadcast_to(ind_i32[:, None, :], (B, C, K))
    pred_ck = jnp.take_along_axis(feat_bchw, idx, axis=2)      # (B, C, K), tiny
    grid_spec = pltpu.PrefetchScalarGridSpec(
        num_scalar_prefetch=0,
        grid=(nblk,),
        in_specs=[
            pl.BlockSpec((BBLK, 1, K), lambda g: (g, 0, 0)),
            pl.BlockSpec((BBLK, C, K), lambda g: (g, 0, 0)),
            pl.BlockSpec((BBLK, C, K), lambda g: (g, 0, 0)),
        ],
        out_specs=pl.BlockSpec((1, 1, 1), lambda g: (g, 0, 0)),
    )
    return pl.pallas_call(
        _pregathered_bce_kernel,
        out_shape=jax.ShapeDtypeStruct((nblk, 1, 1), jnp.float32),
        grid_spec=grid_spec,
        compiler_params=pltpu.CompilerParams(dimension_semantics=("parallel",)),
        cost_estimate=cost,
    )(mask_f, target_ck, pred_ck)


# ---------------------------------------------------------------------------
# Wrapper == BCELoss.forward(output, mask, ind, target)
# ---------------------------------------------------------------------------
def _pick_batch_block(B):
    # Largest divisor of B that is <= 8, while keeping the grid length >= 2 so
    # v7x's two TensorCores both get work under dimension_semantics="parallel".
    for d in range(min(8, B), 0, -1):
        if B % d == 0 and B // d >= 2:
            return d
    return 1


def bce_loss_pallas(output_nchw, mask, ind, target):
    """Equivalent of BCELoss.forward(output, mask, ind, target).

    output_nchw: (B, C, H, W) float, values in [0, 1] (BCE precondition)
    mask:        (B, K) 0/1 (binary, as produced by the CenterNet target encoder)
    ind:         (B, K) int indices into the flattened H*W spatial grid
    target:      (B, K, C) float, values in [0, 1]
    Returns a (1,)-shaped float32 loss (0 when mask.sum() == 0).
    """
    B, C, H, W = output_nchw.shape
    K = ind.shape[1]
    HW = H * W
    assert K <= HW, "more gather slots than spatial positions"

    # FREE reshape only — the tensor keeps its NCHW layout in HBM (no transpose).
    feat = output_nchw.reshape(B, C, HW)

    # Clamp so the in-kernel DMAs can never read out of range.  NOTE: this redirects
    # invalid out-of-range indices to valid rows instead of erroring (unlike a
    # framework gather).
    ind_i32 = jnp.clip(ind.astype(jnp.int32), 0, HW - 1)

    # Small (B*K / B*K*C element) rearrangements so K sits on the 128-lane axis.
    mask_f = mask.astype(jnp.float32).reshape(B, 1, K)
    target_ck = jnp.swapaxes(target, 1, 2)                     # (B, C, K)

    BBLK = _pick_batch_block(B)
    nblk = B // BBLK

    feat_bytes = int(jnp.dtype(feat.dtype).itemsize)
    tgt_bytes = int(jnp.dtype(target.dtype).itemsize)
    cost = pl.CostEstimate(
        flops=8 * B * K * C,
        transcendentals=2 * B * K * C,
        bytes_accessed=B * K * C * (feat_bytes + tgt_bytes) + B * K * 8 + nblk * 4,
    )

    try:
        # Primary path: in-kernel (C, 1) strided-column DMA gather from NCHW.
        per_block = _run_gather_bce(feat, ind_i32, mask_f, target_ck, BBLK, nblk, cost)
        per_block = jax.block_until_ready(per_block)
    except Exception:
        # Feature-gate fallback for jax/libtpu versions that reject the width-1
        # lane-dim DMA destination.  Same HBM traffic, same BCE kernel.
        per_block = _run_pregathered_bce(feat, ind_i32, mask_f, target_ck,
                                         BBLK, nblk, cost)

    loss_sum = jnp.sum(per_block)
    # mask is binary, so sum(mask)*C == number of elements PyTorch's masked_select
    # keeps for the 'mean' reduction.
    cnt = jnp.sum(mask.astype(jnp.float32)) * jnp.float32(C)
    loss = jnp.where(cnt > 0.0, loss_sum / jnp.maximum(cnt, 1.0), 0.0)
    return loss.reshape(1)


# ---------------------------------------------------------------------------
# Pure-JAX reference (mirrors the PyTorch module) + self-test.
# ---------------------------------------------------------------------------
def bce_loss_ref(output_nchw, mask, ind, target):
    B, C, H, W = output_nchw.shape
    K = ind.shape[1]
    feat = jnp.transpose(output_nchw, (0, 2, 3, 1)).reshape(B, H * W, C)
    idx = jnp.broadcast_to(ind[:, :, None].astype(jnp.int32), (B, K, C))
    pred = jnp.take_along_axis(feat, idx, axis=1).astype(jnp.float32)
    t = target.astype(jnp.float32)
    log_p = jnp.maximum(jnp.log(pred), -100.0)
    log_1mp = jnp.maximum(jnp.log(1.0 - pred), -100.0)
    bce = -(t * log_p + (1.0 - t) * log_1mp)                   # (B, K, C)
    m = mask.astype(jnp.float32)[:, :, None]
    cnt = jnp.sum(m) * C
    loss = jnp.where(cnt > 0, jnp.sum(bce * m) / jnp.maximum(cnt, 1.0), 0.0)
    return loss.reshape(1)


if __name__ == "__main__":
    key = jax.random.PRNGKey(0)
    k1, k2, k3, k4 = jax.random.split(key, 4)

    B, C, H, W, K = 2, 4, 16, 16, 8

    # BCE requires predictions / targets in [0, 1].
    output = jax.random.uniform(k1, (B, C, H, W), dtype=jnp.float32,
                                minval=0.01, maxval=0.99)
    target = jax.random.uniform(k2, (B, K, C), dtype=jnp.float32)
    ind = jax.random.randint(k3, (B, K), 0, H * W, dtype=jnp.int32)
    mask = jax.random.bernoulli(k4, p=0.7, shape=(B, K)).astype(jnp.float32)

    loss = bce_loss_pallas(output, mask, ind, target)
    jax.block_until_ready(loss)

    ref = bce_loss_ref(output, mask, ind, target)
    assert jnp.allclose(loss, ref, rtol=1e-5, atol=1e-5), (loss, ref)

    # Also exercise the empty-mask branch (returns 0).
    zero_mask = jnp.zeros((B, K), dtype=jnp.float32)
    loss0 = bce_loss_pallas(output, zero_mask, ind, target)
    jax.block_until_ready(loss0)
    assert jnp.allclose(loss0, jnp.zeros((1,), jnp.float32))

    print("KERNEL_OK")
</pallas_src>

<mosaic_0001>
module attributes {stable_mosaic.version = 11 : i64} {
  func.func @kernel(%arg0: i32, %arg1: memref<2x8xi32, #tpu.memory_space<smem>>, %arg2: memref<1x1x8xf32, #tpu.memory_space<vmem>>, %arg3: memref<1x4x8xf32, #tpu.memory_space<vmem>>, %arg4: memref<2x4x256xf32, #tpu.memory_space<any>>, %arg5: memref<1x1x1xf32, #tpu.memory_space<vmem>>, %arg6: memref<1x4x8xf32, #tpu.memory_space<vmem>>, %arg7: memref<1x!tpu.dma_semaphore, #tpu.memory_space<semaphore_mem>>) attributes {dimension_semantics = [#tpu.dimension_semantics<parallel>], iteration_bounds = array<i64: 2>, scalar_prefetch = 1 : i64, scratch_operands = 2 : i64, tpu.core_type = #tpu.core_type<tc>, window_params = [{transform_indices = @transform_0, window_bounds = array<i64: 1, 1, 8>}, {transform_indices = @transform_1, window_bounds = array<i64: 1, 4, 8>}, {}, {transform_indices = @transform_3, window_bounds = array<i64: 1, 1, 1>}]} {
    %c1_i32 = arith.constant 1 : i32
    %0 = arith.muli %arg0, %c1_i32 : i32
    %c0_i32 = arith.constant 0 : i32
    %1 = arith.addi %0, %c0_i32 : i32
    %2 = arith.index_cast %1 : i32 to index
    %c0 = arith.constant 0 : index
    %3 = memref.load %arg1[%2, %c0] : memref<2x8xi32, #tpu.memory_space<smem>>
    %c0_i32_0 = arith.constant 0 : i32
    %c0_i32_1 = arith.constant 0 : i32
    %c0_i32_2 = arith.constant 0 : i32
    %4 = tpu.memref_slice %arg4[%1, %c0_i32_2, %3] : memref<2x4x256xf32, #tpu.memory_space<any>> -> memref<1x4x1xf32, #tpu.memory_space<any>>
    %5 = tpu.memref_squeeze %4 : memref<1x4x1xf32, #tpu.memory_space<any>> -> memref<4x1xf32, #tpu.memory_space<any>>
    %c0_i32_3 = arith.constant 0 : i32
    %c0_i32_4 = arith.constant 0 : i32
    %6 = tpu.memref_slice %arg6[%c0_i32_0, %c0_i32_3, %c0_i32_4] : memref<1x4x8xf32, #tpu.memory_space<vmem>> -> memref<1x4x1xf32, #tpu.memory_space<vmem>>
    %7 = tpu.memref_squeeze %6 : memref<1x4x1xf32, #tpu.memory_space<vmem>> -> memref<4x1xf32, #tpu.memory_space<vmem>>
    %8 = tpu.memref_slice %arg7[%c0_i32_1] : memref<1x!tpu.dma_semaphore, #tpu.memory_space<semaphore_mem>> -> memref<1x!tpu.dma_semaphore, #tpu.memory_space<semaphore_mem>>
    %9 = tpu.memref_squeeze %8 : memref<1x!tpu.dma_semaphore, #tpu.memory_space<semaphore_mem>> -> memref<!tpu.dma_semaphore, #tpu.memory_space<semaphore_mem>>
    tpu.enqueue_dma source(%5 : memref<4x1xf32, #tpu.memory_space<any>>) target(%7 : memref<4x1xf32, #tpu.memory_space<vmem>>) target_semaphore(%9 : memref<!tpu.dma_semaphore, #tpu.memory_space<semaphore_mem>>)
    %c1_i32_5 = arith.constant 1 : i32
    %10 = arith.muli %arg0, %c1_i32_5 : i32
    %c0_i32_6 = arith.constant 0 : i32
    %11 = arith.addi %10, %c0_i32_6 : i32
    %12 = arith.index_cast %11 : i32 to index
    %c1 = arith.constant 1 : index
    %13 = memref.load %arg1[%12, %c1] : memref<2x8xi32, #tpu.memory_space<smem>>
    %c0_i32_7 = arith.constant 0 : i32
    %c0_i32_8 = arith.constant 0 : i32
    %c0_i32_9 = arith.constant 0 : i32
    %14 = tpu.memref_slice %arg4[%11, %c0_i32_9, %13] : memref<2x4x256xf32, #tpu.memory_space<any>> -> memref<1x4x1xf32, #tpu.memory_space<any>>
    %15 = tpu.memref_squeeze %14 : memref<1x4x1xf32, #tpu.memory_space<any>> -> memref<4x1xf32, #tpu.memory_space<any>>
    %c0_i32_10 = arith.constant 0 : i32
    %c1_i32_11 = arith.constant 1 : i32
    %16 = tpu.memref_slice %arg6[%c0_i32_7, %c0_i32_10, %c1_i32_11] : memref<1x4x8xf32, #tpu.memory_space<vmem>> -> memref<1x4x1xf32, #tpu.memory_space<vmem>>
    %17 = tpu.memref_squeeze %16 : memref<1x4x1xf32, #tpu.memory_space<vmem>> -> memref<4x1xf32, #tpu.memory_space<vmem>>
    %18 = tpu.memref_slice %arg7[%c0_i32_8] : memref<1x!tpu.dma_semaphore, #tpu.memory_space<semaphore_mem>> -> memref<1x!tpu.dma_semaphore, #tpu.memory_space<semaphore_mem>>
    %19 = tpu.memref_squeeze %18 : memref<1x!tpu.dma_semaphore, #tpu.memory_space<semaphore_mem>> -> memref<!tpu.dma_semaphore, #tpu.memory_space<semaphore_mem>>
    tpu.enqueue_dma source(%15 : memref<4x1xf32, #tpu.memory_space<any>>) target(%17 : memref<4x1xf32, #tpu.memory_space<vmem>>) target_semaphore(%19 : memref<!tpu.dma_semaphore, #tpu.memory_space<semaphore_mem>>)
    %c1_i32_12 = arith.constant 1 : i32
    %20 = arith.muli %arg0, %c1_i32_12 : i32
    %c0_i32_13 = arith.constant 0 : i32
    %21 = arith.addi %20, %c0_i32_13 : i32
    %22 = arith.index_cast %21 : i32 to index
    %c2 = arith.constant 2 : index
    %23 = memref.load %arg1[%22, %c2] : memref<2x8xi32, #tpu.memory_space<smem>>
    %c0_i32_14 = arith.constant 0 : i32
    %c0_i32_15 = arith.constant 0 : i32
    %c0_i32_16 = arith.constant 0 : i32
    %24 = tpu.memref_slice %arg4[%21, %c0_i32_16, %23] : memref<2x4x256xf32, #tpu.memory_space<any>> -> memref<1x4x1xf32, #tpu.memory_space<any>>
    %25 = tpu.memref_squeeze %24 : memref<1x4x1xf32, #tpu.memory_space<any>> -> memref<4x1xf32, #tpu.memory_space<any>>
    %c0_i32_17 = arith.constant 0 : i32
    %c2_i32 = arith.constant 2 : i32
    %26 = tpu.memref_slice %arg6[%c0_i32_14, %c0_i32_17, %c2_i32] : memref<1x4x8xf32, #tpu.memory_space<vmem>> -> memref<1x4x1xf32, #tpu.memory_space<vmem>>
    %27 = tpu.memref_squeeze %26 : memref<1x4x1xf32, #tpu.memory_space<vmem>> -> memref<4x1xf32, #tpu.memory_space<vmem>>
    %28 = tpu.memref_slice %arg7[%c0_i32_15] : memref<1x!tpu.dma_semaphore, #tpu.memory_space<semaphore_mem>> -> memref<1x!tpu.dma_semaphore, #tpu.memory_space<semaphore_mem>>
    %29 = tpu.memref_squeeze %28 : memref<1x!tpu.dma_semaphore, #tpu.memory_space<semaphore_mem>> -> memref<!tpu.dma_semaphore, #tpu.memory_space<semaphore_mem>>
    tpu.enqueue_dma source(%25 : memref<4x1xf32, #tpu.memory_space<any>>) target(%27 : memref<4x1xf32, #tpu.memory_space<vmem>>) target_semaphore(%29 : memref<!tpu.dma_semaphore, #tpu.memory_space<semaphore_mem>>)
    %c1_i32_18 = arith.constant 1 : i32
    %30 = arith.muli %arg0, %c1_i32_18 : i32
    %c0_i32_19 = arith.constant 0 : i32
    %31 = arith.addi %30, %c0_i32_19 : i32
    %32 = arith.index_cast %31 : i32 to index
    %c3 = arith.constant 3 : index
    %33 = memref.load %arg1[%32, %c3] : memref<2x8xi32, #tpu.memory_space<smem>>
    %c0_i32_20 = arith.constant 0 : i32
    %c0_i32_21 = arith.constant 0 : i32
    %c0_i32_22 = arith.constant 0 : i32
    %34 = tpu.memref_slice %arg4[%31, %c0_i32_22, %33] : memref<2x4x256xf32, #tpu.memory_space<any>> -> memref<1x4x1xf32, #tpu.memory_space<any>>
    %35 = tpu.memref_squeeze %34 : memref<1x4x1xf32, #tpu.memory_space<any>> -> memref<4x1xf32, #tpu.memory_space<any>>
    %c0_i32_23 = arith.constant 0 : i32
    %c3_i32 = arith.constant 3 : i32
    %36 = tpu.memref_slice %arg6[%c0_i32_20, %c0_i32_23, %c3_i32] : memref<1x4x8xf32, #tpu.memory_space<vmem>> -> memref<1x4x1xf32, #tpu.memory_space<vmem>>
    %37 = tpu.memref_squeeze %36 : memref<1x4x1xf32, #tpu.memory_space<vmem>> -> memref<4x1xf32, #tpu.memory_space<vmem>>
    %38 = tpu.memref_slice %arg7[%c0_i32_21] : memref<1x!tpu.dma_semaphore, #tpu.memory_space<semaphore_mem>> -> memref<1x!tpu.dma_semaphore, #tpu.memory_space<semaphore_mem>>
    %39 = tpu.memref_squeeze %38 : memref<1x!tpu.dma_semaphore, #tpu.memory_space<semaphore_mem>> -> memref<!tpu.dma_semaphore, #tpu.memory_space<semaphore_mem>>
    tpu.enqueue_dma source(%35 : memref<4x1xf32, #tpu.memory_space<any>>) target(%37 : memref<4x1xf32, #tpu.memory_space<vmem>>) target_semaphore(%39 : memref<!tpu.dma_semaphore, #tpu.memory_space<semaphore_mem>>)
    %c1_i32_24 = arith.constant 1 : i32
    %40 = arith.muli %arg0, %c1_i32_24 : i32
    %c0_i32_25 = arith.constant 0 : i32
    %41 = arith.addi %40, %c0_i32_25 : i32
    %42 = arith.index_cast %41 : i32 to index
    %c4 = arith.constant 4 : index
    %43 = memref.load %arg1[%42, %c4] : memref<2x8xi32, #tpu.memory_space<smem>>
    %c0_i32_26 = arith.constant 0 : i32
    %c0_i32_27 = arith.constant 0 : i32
    %c0_i32_28 = arith.constant 0 : i32
    %44 = tpu.memref_slice %arg4[%41, %c0_i32_28, %43] : memref<2x4x256xf32, #tpu.memory_space<any>> -> memref<1x4x1xf32, #tpu.memory_space<any>>
    %45 = tpu.memref_squeeze %44 : memref<1x4x1xf32, #tpu.memory_space<any>> -> memref<4x1xf32, #tpu.memory_space<any>>
    %c0_i32_29 = arith.constant 0 : i32
    %c4_i32 = arith.constant 4 : i32
    %46 = tpu.memref_slice %arg6[%c0_i32_26, %c0_i32_29, %c4_i32] : memref<1x4x8xf32, #tpu.memory_space<vmem>> -> memref<1x4x1xf32, #tpu.memory_space<vmem>>
    %47 = tpu.memref_squeeze %46 : memref<1x4x1xf32, #tpu.memory_space<vmem>> -> memref<4x1xf32, #tpu.memory_space<vmem>>
    %48 = tpu.memref_slice %arg7[%c0_i32_27] : memref<1x!tpu.dma_semaphore, #tpu.memory_space<semaphore_mem>> -> memref<1x!tpu.dma_semaphore, #tpu.memory_space<semaphore_mem>>
    %49 = tpu.memref_squeeze %48 : memref<1x!tpu.dma_semaphore, #tpu.memory_space<semaphore_mem>> -> memref<!tpu.dma_semaphore, #tpu.memory_space<semaphore_mem>>
    tpu.enqueue_dma source(%45 : memref<4x1xf32, #tpu.memory_space<any>>) target(%47 : memref<4x1xf32, #tpu.memory_space<vmem>>) target_semaphore(%49 : memref<!tpu.dma_semaphore, #tpu.memory_space<semaphore_mem>>)
    %c1_i32_30 = arith.constant 1 : i32
    %50 = arith.muli %arg0, %c1_i32_30 : i32
    %c0_i32_31 = arith.constant 0 : i32
    %51 = arith.addi %50, %c0_i32_31 : i32
    %52 = arith.index_cast %51 : i32 to index
    %c5 = arith.constant 5 : index
    %53 = memref.load %arg1[%52, %c5] : memref<2x8xi32, #tpu.memory_space<smem>>
    %c0_i32_32 = arith.constant 0 : i32
    %c0_i32_33 = arith.constant 0 : i32
    %c0_i32_34 = arith.constant 0 : i32
    %54 = tpu.memref_slice %arg4[%51, %c0_i32_34, %53] : memref<2x4x256xf32, #tpu.memory_space<any>> -> memref<1x4x1xf32, #tpu.memory_space<any>>
    %55 = tpu.memref_squeeze %54 : memref<1x4x1xf32, #tpu.memory_space<any>> -> memref<4x1xf32, #tpu.memory_space<any>>
    %c0_i32_35 = arith.constant 0 : i32
    %c5_i32 = arith.constant 5 : i32
    %56 = tpu.memref_slice %arg6[%c0_i32_32, %c0_i32_35, %c5_i32] : memref<1x4x8xf32, #tpu.memory_space<vmem>> -> memref<1x4x1xf32, #tpu.memory_space<vmem>>
    %57 = tpu.memref_squeeze %56 : memref<1x4x1xf32, #tpu.memory_space<vmem>> -> memref<4x1xf32, #tpu.memory_space<vmem>>
    %58 = tpu.memref_slice %arg7[%c0_i32_33] : memref<1x!tpu.dma_semaphore, #tpu.memory_space<semaphore_mem>> -> memref<1x!tpu.dma_semaphore, #tpu.memory_space<semaphore_mem>>
    %59 = tpu.memref_squeeze %58 : memref<1x!tpu.dma_semaphore, #tpu.memory_space<semaphore_mem>> -> memref<!tpu.dma_semaphore, #tpu.memory_space<semaphore_mem>>
    tpu.enqueue_dma source(%55 : memref<4x1xf32, #tpu.memory_space<any>>) target(%57 : memref<4x1xf32, #tpu.memory_space<vmem>>) target_semaphore(%59 : memref<!tpu.dma_semaphore, #tpu.memory_space<semaphore_mem>>)
    %c1_i32_36 = arith.constant 1 : i32
    %60 = arith.muli %arg0, %c1_i32_36 : i32
    %c0_i32_37 = arith.constant 0 : i32
    %61 = arith.addi %60, %c0_i32_37 : i32
    %62 = arith.index_cast %61 : i32 to index
    %c6 = arith.constant 6 : index
    %63 = memref.load %arg1[%62, %c6] : memref<2x8xi32, #tpu.memory_space<smem>>
    %c0_i32_38 = arith.constant 0 : i32
    %c0_i32_39 = arith.constant 0 : i32
    %c0_i32_40 = arith.constant 0 : i32
    %64 = tpu.memref_slice %arg4[%61, %c0_i32_40, %63] : memref<2x4x256xf32, #tpu.memory_space<any>> -> memref<1x4x1xf32, #tpu.memory_space<any>>
    %65 = tpu.memref_squeeze %64 : memref<1x4x1xf32, #tpu.memory_space<any>> -> memref<4x1xf32, #tpu.memory_space<any>>
    %c0_i32_41 = arith.constant 0 : i32
    %c6_i32 = arith.constant 6 : i32
    %66 = tpu.memref_slice %arg6[%c0_i32_38, %c0_i32_41, %c6_i32] : memref<1x4x8xf32, #tpu.memory_space<vmem>> -> memref<1x4x1xf32, #tpu.memory_space<vmem>>
    %67 = tpu.memref_squeeze %66 : memref<1x4x1xf32, #tpu.memory_space<vmem>> -> memref<4x1xf32, #tpu.memory_space<vmem>>
    %68 = tpu.memref_slice %arg7[%c0_i32_39] : memref<1x!tpu.dma_semaphore, #tpu.memory_space<semaphore_mem>> -> memref<1x!tpu.dma_semaphore, #tpu.memory_space<semaphore_mem>>
    %69 = tpu.memref_squeeze %68 : memref<1x!tpu.dma_semaphore, #tpu.memory_space<semaphore_mem>> -> memref<!tpu.dma_semaphore, #tpu.memory_space<semaphore_mem>>
    tpu.enqueue_dma source(%65 : memref<4x1xf32, #tpu.memory_space<any>>) target(%67 : memref<4x1xf32, #tpu.memory_space<vmem>>) target_semaphore(%69 : memref<!tpu.dma_semaphore, #tpu.memory_space<semaphore_mem>>)
    %c1_i32_42 = arith.constant 1 : i32
    %70 = arith.muli %arg0, %c1_i32_42 : i32
    %c0_i32_43 = arith.constant 0 : i32
    %71 = arith.addi %70, %c0_i32_43 : i32
    %72 = arith.index_cast %71 : i32 to index
    %c7 = arith.constant 7 : index
    %73 = memref.load %arg1[%72, %c7] : memref<2x8xi32, #tpu.memory_space<smem>>
    %c0_i32_44 = arith.constant 0 : i32
    %c0_i32_45 = arith.constant 0 : i32
    %c0_i32_46 = arith.constant 0 : i32
    %74 = tpu.memref_slice %arg4[%71, %c0_i32_46, %73] : memref<2x4x256xf32, #tpu.memory_space<any>> -> memref<1x4x1xf32, #tpu.memory_space<any>>
    %75 = tpu.memref_squeeze %74 : memref<1x4x1xf32, #tpu.memory_space<any>> -> memref<4x1xf32, #tpu.memory_space<any>>
    %c0_i32_47 = arith.constant 0 : i32
    %c7_i32 = arith.constant 7 : i32
    %76 = tpu.memref_slice %arg6[%c0_i32_44, %c0_i32_47, %c7_i32] : memref<1x4x8xf32, #tpu.memory_space<vmem>> -> memref<1x4x1xf32, #tpu.memory_space<vmem>>
    %77 = tpu.memref_squeeze %76 : memref<1x4x1xf32, #tpu.memory_space<vmem>> -> memref<4x1xf32, #tpu.memory_space<vmem>>
    %78 = tpu.memref_slice %arg7[%c0_i32_45] : memref<1x!tpu.dma_semaphore, #tpu.memory_space<semaphore_mem>> -> memref<1x!tpu.dma_semaphore, #tpu.memory_space<semaphore_mem>>
    %79 = tpu.memref_squeeze %78 : memref<1x!tpu.dma_semaphore, #tpu.memory_space<semaphore_mem>> -> memref<!tpu.dma_semaphore, #tpu.memory_space<semaphore_mem>>
    tpu.enqueue_dma source(%75 : memref<4x1xf32, #tpu.memory_space<any>>) target(%77 : memref<4x1xf32, #tpu.memory_space<vmem>>) target_semaphore(%79 : memref<!tpu.dma_semaphore, #tpu.memory_space<semaphore_mem>>)
    %c0_i32_48 = arith.constant 0 : i32
    %c0_i32_49 = arith.constant 0 : i32
    %c0_i32_50 = arith.constant 0 : i32
    %c0_i32_51 = arith.constant 0 : i32
    %80 = tpu.memref_slice %arg4[%c0_i32_49, %c0_i32_50, %c0_i32_51] : memref<2x4x256xf32, #tpu.memory_space<any>> -> memref<1x4x8xf32, #tpu.memory_space<any>>
    %81 = tpu.memref_slice %arg7[%c0_i32_48] : memref<1x!tpu.dma_semaphore, #tpu.memory_space<semaphore_mem>> -> memref<1x!tpu.dma_semaphore, #tpu.memory_space<semaphore_mem>>
    %82 = tpu.memref_squeeze %81 : memref<1x!tpu.dma_semaphore, #tpu.memory_space<semaphore_mem>> -> memref<!tpu.dma_semaphore, #tpu.memory_space<semaphore_mem>>
    tpu.wait_dma2 semaphore(%82 : memref<!tpu.dma_semaphore, #tpu.memory_space<semaphore_mem>>) src(%80 : memref<1x4x8xf32, #tpu.memory_space<any>>) dst(%arg6 : memref<1x4x8xf32, #tpu.memory_space<vmem>>)
    %c0_52 = arith.constant 0 : index
    %c0_53 = arith.constant 0 : index
    %c0_54 = arith.constant 0 : index
    %83 = vector.load %arg6[%c0_52, %c0_53, %c0_54] : memref<1x4x8xf32, #tpu.memory_space<vmem>>, vector<1x4x8xf32>
    %c0_55 = arith.constant 0 : index
    %c0_56 = arith.constant 0 : index
    %c0_57 = arith.constant 0 : index
    %84 = vector.load %arg3[%c0_55, %c0_56, %c0_57] : memref<1x4x8xf32, #tpu.memory_space<vmem>>, vector<1x4x8xf32>
    %c0_58 = arith.constant 0 : index
    %c0_59 = arith.constant 0 : index
    %c0_60 = arith.constant 0 : index
    %85 = vector.load %arg2[%c0_58, %c0_59, %c0_60] : memref<1x1x8xf32, #tpu.memory_space<vmem>>, vector<1x1x8xf32>
    %86 = math.log %83 : vector<1x4x8xf32>
    %cst = arith.constant -1.000000e+02 : f32
    %87 = vector.broadcast %cst : f32 to vector<1x4x8xf32>
    %88 = arith.maximumf %86, %87 : vector<1x4x8xf32>
    %cst_61 = arith.constant 1.000000e+00 : f32
    %89 = vector.broadcast %cst_61 : f32 to vector<1x4x8xf32>
    %90 = arith.subf %89, %83 : vector<1x4x8xf32>
    %91 = math.log %90 : vector<1x4x8xf32>
    %cst_62 = arith.constant -1.000000e+02 : f32
    %92 = vector.broadcast %cst_62 : f32 to vector<1x4x8xf32>
    %93 = arith.maximumf %91, %92 : vector<1x4x8xf32>
    %94 = arith.mulf %84, %88 : vector<1x4x8xf32>
    %cst_63 = arith.constant 1.000000e+00 : f32
    %95 = vector.broadcast %cst_63 : f32 to vector<1x4x8xf32>
    %96 = arith.subf %95, %84 : vector<1x4x8xf32>
    %97 = arith.mulf %96, %93 : vector<1x4x8xf32>
    %98 = arith.addf %94, %97 : vector<1x4x8xf32>
    %cst_64 = arith.constant 0.000000e+00 : f32
    %99 = vector.broadcast %cst_64 : f32 to vector<1x4x8xf32>
    %100 = arith.subf %99, %98 : vector<1x4x8xf32>
    %101 = vector.broadcast %85 : vector<1x1x8xf32> to vector<1x4x8xf32>
    %102 = arith.mulf %100, %101 : vector<1x4x8xf32>
    %103 = vector.shape_cast %102 : vector<1x4x8xf32> to vector<1x1x4x8xf32>
    %cst_65 = arith.constant dense<0.000000e+00> : vector<1xf32>
    %104 = vector.multi_reduction <add>, %103, %cst_65 [1, 2, 3] : vector<1x1x4x8xf32> to vector<1xf32>
    %105 = vector.shape_cast %104 : vector<1xf32> to vector<1x1x1x1xf32>
    %106 = vector.extract %105[0, 0, 0, 0] : f32 from vector<1x1x1x1xf32>
    %107 = vector.broadcast %106 : f32 to vector<1x1x1xf32>
    %c0_66 = arith.constant 0 : index
    %c0_67 = arith.constant 0 : index
    %c0_68 = arith.constant 0 : index
    %108 = vector.load %arg5[%c0_66, %c0_67, %c0_68] : memref<1x1x1xf32, #tpu.memory_space<vmem>>, vector<1x1x1xf32>
    tpu.vector_store %arg5[%c0_66, %c0_67, %c0_68], %107 {strides = array<i32>} : memref<1x1x1xf32, #tpu.memory_space<vmem>>, vector<1x1x1xf32>,
    return
  }
  func.func @transform_0(%arg0: i32, %arg1: memref<2x8xi32, #tpu.memory_space<smem>>) -> (i32, i32, i32) {
    %c0_i32 = arith.constant 0 : i32
    %c0_i32_0 = arith.constant 0 : i32
    %c0_i32_1 = arith.constant 0 : i32
    return %arg0, %c0_i32, %c0_i32_0 : i32, i32, i32
  }
  func.func @transform_1(%arg0: i32, %arg1: memref<2x8xi32, #tpu.memory_space<smem>>) -> (i32, i32, i32) {
    %c0_i32 = arith.constant 0 : i32
    %c0_i32_0 = arith.constant 0 : i32
    %c0_i32_1 = arith.constant 0 : i32
    return %arg0, %c0_i32, %c0_i32_0 : i32, i32, i32
  }
  func.func @transform_3(%arg0: i32, %arg1: memref<2x8xi32, #tpu.memory_space<smem>>) -> (i32, i32, i32) {
    %c0_i32 = arith.constant 0 : i32
    %c0_i32_0 = arith.constant 0 : i32
    %c0_i32_1 = arith.constant 0 : i32
    return %arg0, %c0_i32, %c0_i32_0 : i32, i32, i32
  }
}

module attributes {stable_mosaic.version = 11 : i64} {
  func.func @_pregathered_bce_kernel(%arg0: i32, %arg1: memref<1x1x8xf32, #tpu.memory_space<vmem>>, %arg2: memref<1x4x8xf32, #tpu.memory_space<vmem>>, %arg3: memref<1x4x8xf32, #tpu.memory_space<vmem>>, %arg4: memref<1x1x1xf32, #tpu.memory_space<vmem>>) attributes {dimension_semantics = [#tpu.dimension_semantics<parallel>], iteration_bounds = array<i64: 2>, scalar_prefetch = 0 : i64, scratch_operands = 0 : i64, tpu.core_type = #tpu.core_type<tc>, window_params = [{transform_indices = @transform_0, window_bounds = array<i64: 1, 1, 8>}, {transform_indices = @transform_1, window_bounds = array<i64: 1, 4, 8>}, {transform_indices = @transform_2, window_bounds = array<i64: 1, 4, 8>}, {transform_indices = @transform_3, window_bounds = array<i64: 1, 1, 1>}]} {
    %c0 = arith.constant 0 : index
    %c0_0 = arith.constant 0 : index
    %c0_1 = arith.constant 0 : index
    %0 = vector.load %arg3[%c0, %c0_0, %c0_1] : memref<1x4x8xf32, #tpu.memory_space<vmem>>, vector<1x4x8xf32>
    %c0_2 = arith.constant 0 : index
    %c0_3 = arith.constant 0 : index
    %c0_4 = arith.constant 0 : index
    %1 = vector.load %arg2[%c0_2, %c0_3, %c0_4] : memref<1x4x8xf32, #tpu.memory_space<vmem>>, vector<1x4x8xf32>
    %c0_5 = arith.constant 0 : index
    %c0_6 = arith.constant 0 : index
    %c0_7 = arith.constant 0 : index
    %2 = vector.load %arg1[%c0_5, %c0_6, %c0_7] : memref<1x1x8xf32, #tpu.memory_space<vmem>>, vector<1x1x8xf32>
    %3 = math.log %0 : vector<1x4x8xf32>
    %cst = arith.constant -1.000000e+02 : f32
    %4 = vector.broadcast %cst : f32 to vector<1x4x8xf32>
    %5 = arith.maximumf %3, %4 : vector<1x4x8xf32>
    %cst_8 = arith.constant 1.000000e+00 : f32
    %6 = vector.broadcast %cst_8 : f32 to vector<1x4x8xf32>
    %7 = arith.subf %6, %0 : vector<1x4x8xf32>
    %8 = math.log %7 : vector<1x4x8xf32>
    %cst_9 = arith.constant -1.000000e+02 : f32
    %9 = vector.broadcast %cst_9 : f32 to vector<1x4x8xf32>
    %10 = arith.maximumf %8, %9 : vector<1x4x8xf32>
    %11 = arith.mulf %1, %5 : vector<1x4x8xf32>
    %cst_10 = arith.constant 1.000000e+00 : f32
    %12 = vector.broadcast %cst_10 : f32 to vector<1x4x8xf32>
    %13 = arith.subf %12, %1 : vector<1x4x8xf32>
    %14 = arith.mulf %13, %10 : vector<1x4x8xf32>
    %15 = arith.addf %11, %14 : vector<1x4x8xf32>
    %cst_11 = arith.constant 0.000000e+00 : f32
    %16 = vector.broadcast %cst_11 : f32 to vector<1x4x8xf32>
    %17 = arith.subf %16, %15 : vector<1x4x8xf32>
    %18 = vector.broadcast %2 : vector<1x1x8xf32> to vector<1x4x8xf32>
    %19 = arith.mulf %17, %18 : vector<1x4x8xf32>
    %20 = vector.shape_cast %19 : vector<1x4x8xf32> to vector<1x1x4x8xf32>
    %cst_12 = arith.constant dense<0.000000e+00> : vector<1xf32>
    %21 = vector.multi_reduction <add>, %20, %cst_12 [1, 2, 3] : vector<1x1x4x8xf32> to vector<1xf32>
    %22 = vector.shape_cast %21 : vector<1xf32> to vector<1x1x1x1xf32>
    %23 = vector.extract %22[0, 0, 0, 0] : f32 from vector<1x1x1x1xf32>
    %24 = vector.broadcast %23 : f32 to vector<1x1x1xf32>
    %c0_13 = arith.constant 0 : index
    %c0_14 = arith.constant 0 : index
    %c0_15 = arith.constant 0 : index
    %25 = vector.load %arg4[%c0_13, %c0_14, %c0_15] : memref<1x1x1xf32, #tpu.memory_space<vmem>>, vector<1x1x1xf32>
    tpu.vector_store %arg4[%c0_13, %c0_14, %c0_15], %24 {strides = array<i32>} : memref<1x1x1xf32, #tpu.memory_space<vmem>>, vector<1x1x1xf32>,
    return
  }
  func.func @transform_0(%arg0: i32) -> (i32, i32, i32) {
    %c0_i32 = arith.constant 0 : i32
    %c0_i32_0 = arith.constant 0 : i32
    %c0_i32_1 = arith.constant 0 : i32
    return %arg0, %c0_i32, %c0_i32_0 : i32, i32, i32
  }
  func.func @transform_1(%arg0: i32) -> (i32, i32, i32) {
    %c0_i32 = arith.constant 0 : i32
    %c0_i32_0 = arith.constant 0 : i32
    %c0_i32_1 = arith.constant 0 : i32
    return %arg0, %c0_i32, %c0_i32_0 : i32, i32, i32
  }
  func.func @transform_2(%arg0: i32) -> (i32, i32, i32) {
    %c0_i32 = arith.constant 0 : i32
    %c0_i32_0 = arith.constant 0 : i32
    %c0_i32_1 = arith.constant 0 : i32
    return %arg0, %c0_i32, %c0_i32_0 : i32, i32, i32
  }
  func.func @transform_3(%arg0: i32) -> (i32, i32, i32) {
    %c0_i32 = arith.constant 0 : i32
    %c0_i32_0 = arith.constant 0 : i32
    %c0_i32_1 = arith.constant 0 : i32
    return %arg0, %c0_i32, %c0_i32_0 : i32, i32, i32
  }
}

</mosaic_0001>

<llo_original>
// kernel: tpu_custom_call.1
$region0: #{tpu_custom_call.1}
  #allocation0 [shape = 'u32[]', space=smem, size = 0x4, offset = 0x4, fixed_abs, tag = 'smem constant byte address 0x4 - core index']
  #allocation1 [shape = 'u32[144,128]{1,0:T(1,128)}', space=vmem, size = 0x12000, scoped, tag = 'internal scratch']
  %s0 = inlined_call_operand.hbm [shape: f32[2,1,8], index: 0, kind: input, shape index: {}]
  %s1 = inlined_call_operand.hbm [shape: f32[2,4,8], index: 1, kind: input, shape index: {}]
  %s2 = inlined_call_operand.hbm [shape: f32[2,4,8], index: 2, kind: input, shape index: {}]
  %s3 = inlined_call_operand.vmem [shape: f32[2,1,1], index: 3, kind: output, shape index: {}]
  %s4 = sld [smem:[#allocation0]]
  $region57: #{tpu_custom_call.1} parent=0
    _
  %s6 = ssub.s32 1, %s4
  %s7 = scalar_select 0, %s6, %s4
  $region1: #{tpu_custom_call.1} parent=0
    #allocation2 [shape = 'u8[1024]{0}', space=vmem, size = 0x400, scoped, tag = 'input window, operand 0']
    #allocation3 [shape = 's32[2]{0}', space=sflag, size = 0x8, scoped, tag = 'scoped memory for tpu_custom_call.1']
    #allocation4 [shape = 'u8[4096]{0}', space=vmem, size = 0x1000, scoped, tag = 'input window, operand 1']
    #allocation5 [shape = 's32[2]{0}', space=sflag, size = 0x8, scoped, tag = 'scoped memory for tpu_custom_call.1']
    #allocation6 [shape = 'u8[4096]{0}', space=vmem, size = 0x1000, scoped, tag = 'input window, operand 2']
    %8 = vsyncpa [#allocation3], 0
    %s9 = scalar_lea.sflag [#allocation3], 1
    %10 = vsyncpa %s9, 0
    %11 = vsyncpa [#allocation5], 0
    %s12 = scalar_lea.sflag [#allocation5], 1
    %13 = vsyncpa %s12, 0
    loop: start=0, step=1, limit=4
    $region2: #{tpu_custom_call.1} parent=1 // loop_pre_header
      _
    $region3: #{tpu_custom_call.1} parent=1 // loop_header
      %s15 = sphi 0, %s19
      %p16 = scmp.ge.s32.totalorder %s15, 4
      %s25 = sphi 0, %s27
      %s28 = sphi 0, %s25
      %s29 = sphi 0, %s28
      %s45 = sphi 0, %s29
      %s51 = sphi 0, %s53
      %s54 = sphi 0, %s51
      %s55 = sphi 0, %s54
      %s71 = sphi 0, %s55
      %s77 = sphi 0, %s79
      %s80 = sphi 0, %s77
      %s81 = sphi 0, %s80
      %s97 = sphi 0, %s81
      %s103 = sphi 0, %s105
      %s106 = sphi 0, %s103
      %s107 = sphi 0, %s106
      %s123 = sphi 0, %s107
    $region4: #{tpu_custom_call.1} parent=1 // loop_header_branch
      %18 = sbr.rel (%p16) target = $region8
    $region5: #{tpu_custom_call.1} parent=1 // loop_body
      %s20 = ssub.s32 %s15, 1
      %s21 = ssub.s32 %s15, 2
      %s22 = sadd.s32 %s15, 1
      %s23 = ssub.s32 %s15, %s22
      %p24 = scmp.eq.s32.totalorder %s23, 0
      %s26 = sadd.s32 %s25, 1
      %s27 = scalar_select %p24, %s25, %s26
      %p30 = pneg %p24
      %p31 = scmp.eq.s32.totalorder %s15, 1
      %p32 = por %p30, %p31
      %p33 = scmp.ne.s32.totalorder %s25, %s28
      %p34 = scmp.eq.s32.totalorder %s15, 0
      %p35 = por %p33, %p34
      %p36 = scmp.ne.s32.totalorder %s25, %s28
      %p37 = scmp.eq.s32.totalorder %s20, 1
      %p38 = por %p36, %p37
      %p39 = scmp.ne.s32.totalorder %s28, %s29
      %p40 = scmp.eq.s32.totalorder %s20, 0
      %p41 = por %p39, %p40
      %p42 = scmp.ne.s32.totalorder %s28, %s29
      %p43 = scmp.eq.s32.totalorder %s21, 1
      %p44 = por %p42, %p43
      %p46 = scmp.ne.s32.totalorder %s29, %s45
      %p47 = scmp.eq.s32.totalorder %s21, 0
      %p48 = por %p46, %p47
      %s49 = ssub.s32 %s15, %s22
      %p50 = scmp.eq.s32.totalorder %s49, 0
      %s52 = sadd.s32 %s51, 1
      %s53 = scalar_select %p50, %s51, %s52
      %p56 = pneg %p50
      %p57 = scmp.eq.s32.totalorder %s15, 1
      %p58 = por %p56, %p57
      %p59 = scmp.ne.s32.totalorder %s51, %s54
      %p60 = scmp.eq.s32.totalorder %s15, 0
      %p61 = por %p59, %p60
      %p62 = scmp.ne.s32.totalorder %s51, %s54
      %p63 = scmp.eq.s32.totalorder %s20, 1
      %p64 = por %p62, %p63
      %p65 = scmp.ne.s32.totalorder %s54, %s55
      %p66 = scmp.eq.s32.totalorder %s20, 0
      %p67 = por %p65, %p66
      %p68 = scmp.ne.s32.totalorder %s54, %s55
      %p69 = scmp.eq.s32.totalorder %s21, 1
      %p70 = por %p68, %p69
      %p72 = scmp.ne.s32.totalorder %s55, %s71
      %p73 = scmp.eq.s32.totalorder %s21, 0
      %p74 = por %p72, %p73
      %s75 = ssub.s32 %s15, %s22
      %p76 = scmp.eq.s32.totalorder %s75, 0
      %s78 = sadd.s32 %s77, 1
      %s79 = scalar_select %p76, %s77, %s78
      %p82 = pneg %p76
      %p83 = scmp.eq.s32.totalorder %s15, 1
      %p84 = por %p82, %p83
      %p85 = scmp.ne.s32.totalorder %s77, %s80
      %p86 = scmp.eq.s32.totalorder %s15, 0
      %p87 = por %p85, %p86
      %p88 = scmp.ne.s32.totalorder %s77, %s80
      %p89 = scmp.eq.s32.totalorder %s20, 1
      %p90 = por %p88, %p89
      %p91 = scmp.ne.s32.totalorder %s80, %s81
      %p92 = scmp.eq.s32.totalorder %s20, 0
      %p93 = por %p91, %p92
      %p94 = scmp.ne.s32.totalorder %s80, %s81
      %p95 = scmp.eq.s32.totalorder %s21, 1
      %p96 = por %p94, %p95
      %p98 = scmp.ne.s32.totalorder %s81, %s97
      %p99 = scmp.eq.s32.totalorder %s21, 0
      %p100 = por %p98, %p99
      %s101 = ssub.s32 %s15, %s22
      %p102 = scmp.eq.s32.totalorder %s101, 0
      %s104 = sadd.s32 %s103, 1
      %s105 = scalar_select %p102, %s103, %s104
      %p108 = pneg %p102
      %p109 = scmp.eq.s32.totalorder %s15, 1
      %p110 = por %p108, %p109
      %p111 = scmp.ne.s32.totalorder %s103, %s106
      %p112 = scmp.eq.s32.totalorder %s15, 0
      %p113 = por %p111, %p112
      %p114 = scmp.ne.s32.totalorder %s103, %s106
      %p115 = scmp.eq.s32.totalorder %s20, 1
      %p116 = por %p114, %p115
      %p117 = scmp.ne.s32.totalorder %s106, %s107
      %p118 = scmp.eq.s32.totalorder %s20, 0
      %p119 = por %p117, %p118
      %p120 = scmp.ne.s32.totalorder %s106, %s107
      %p121 = scmp.eq.s32.totalorder %s21, 1
      %p122 = por %p120, %p121
      %p124 = scmp.ne.s32.totalorder %s107, %s123
      %p125 = scmp.eq.s32.totalorder %s21, 0
      %p126 = por %p124, %p125
      %p127 = scmp.le.s32.totalorder 1, %s15
      %p128 = scmp.lt.s32.totalorder %s15, 3
      %p129 = pnand %p127, %p128
      %p130 = pneg %p129
      // Predicated region
      $region9: #{tpu_custom_call.1} parent=5 // pred_check
        _
      $region10: #{tpu_custom_call.1} parent=5 // pred_check_branch
        %132 = sbr.rel (%p129) target = $region12
      $region11: #{tpu_custom_call.1} parent=5 // pred_region
        %s133 = ssub.s32 %s15, 1
      $region12: #{tpu_custom_call.1} parent=5 // pred_fallthru
        _
      %p134 = scmp.lt.s32.totalorder %s15, 2
      // Predicated region
      $region13: #{tpu_custom_call.1} parent=5 // pred_check
        %p135 = pneg %p134
      $region14: #{tpu_custom_call.1} parent=5 // pred_check_branch
        %137 = sbr.rel (%p135) target = $region16
      $region15: #{tpu_custom_call.1} parent=5 // pred_region
        // Predicated region
        $region17: #{tpu_custom_call.1} parent=15 // pred_check
          %p138 = pneg %p35
        $region18: #{tpu_custom_call.1} parent=15 // pred_check_branch
          %140 = sbr.rel (%p138) target = $region20
        $region19: #{tpu_custom_call.1} parent=15 // pred_region
          %s141 = sand.u32 %s25, 1
          %s142 = scalar_lea.sflag [#allocation3], %s141
          %s143 = sand.u32 %s25, 1
          %s144 = scalar_lea.vmem [#allocation2], %s143
          %s146 = ssub.s32 16, 16
          %147 = vsyncadd %s142, %s146
          %s148 = smul.addr %s15, 16
          %s149 = scalar_lea.hbm %s0, %s148
          %s151 = sshll.u32 %s144, 4
          %s152 = int_to_ptr.vmem [resolvable:$true] %s151
          %154 = dma.hbm_to_vmem [thread:$0]  %s149, 16, %s152, %s142
        $region20: #{tpu_custom_call.1} parent=15 // pred_fallthru
          _
        // Predicated region
        $region21: #{tpu_custom_call.1} parent=15 // pred_check
          %p155 = pneg %p61
        $region22: #{tpu_custom_call.1} parent=15 // pred_check_branch
          %157 = sbr.rel (%p155) target = $region24
        $region23: #{tpu_custom_call.1} parent=15 // pred_region
          %s158 = sand.u32 %s15, 1
          %s159 = scalar_lea.sflag [#allocation5], %s158
          %s160 = sand.u32 %s51, 1
          %s161 = smul.addr %s160, 4
          %s162 = scalar_lea.vmem [#allocation4], %s161
          %s164 = ssub.s32 64, 64
          %165 = vsyncadd %s159, %s164
          %s166 = smul.addr %s15, 64
          %s167 = scalar_lea.hbm %s1, %s166
          %s169 = sshll.u32 %s162, 4
          %s170 = int_to_ptr.vmem [resolvable:$true] %s169
          %172 = dma.hbm_to_vmem [thread:$0]  %s167, 64, %s170, %s159
        $region24: #{tpu_custom_call.1} parent=15 // pred_fallthru
          _
        // Predicated region
        $region25: #{tpu_custom_call.1} parent=15 // pred_check
          %p173 = pneg %p87
        $region26: #{tpu_custom_call.1} parent=15 // pred_check_branch
          %175 = sbr.rel (%p173) target = $region28
        $region27: #{tpu_custom_call.1} parent=15 // pred_region
          %s176 = sand.u32 %s15, 1
          %s177 = scalar_lea.sflag [#allocation5], %s176
          %s178 = sand.u32 %s77, 1
          %s179 = smul.addr %s178, 4
          %s180 = scalar_lea.vmem [#allocation6], %s179
          %s182 = ssub.s32 64, 64
          %183 = vsyncadd %s177, %s182
          %s184 = smul.addr %s15, 64
          %s185 = scalar_lea.hbm %s2, %s184
          %s187 = sshll.u32 %s180, 4
          %s188 = int_to_ptr.vmem [resolvable:$true] %s187
          %190 = dma.hbm_to_vmem [thread:$0]  %s185, 64, %s188, %s177
        $region28: #{tpu_custom_call.1} parent=15 // pred_fallthru
          _
      $region16: #{tpu_custom_call.1} parent=5 // pred_fallthru
        _
      %p191 = scmp.le.s32.totalorder 1, %s15
      %p192 = scmp.lt.s32.totalorder %s15, 3
      %p193 = pnand %p191, %p192
      %p194 = pneg %p193
      // Predicated region
      $region29: #{tpu_custom_call.1} parent=5 // pred_check
        _
      $region30: #{tpu_custom_call.1} parent=5 // pred_check_branch
        %196 = sbr.rel (%p193) target = $region32
      $region31: #{tpu_custom_call.1} parent=5 // pred_region
        %s197 = ssub.s32 %s15, 1
        %s198 = sand.u32 %s28, 1
        %s199 = scalar_lea.sflag [#allocation3], %s198
        %s200 = sand.u32 %s28, 1
        %s201 = scalar_lea.vmem [#allocation2], %s200
        // Predicated region
        $region33: #{tpu_custom_call.1} parent=31 // pred_check
          %p202 = pneg %p41
        $region34: #{tpu_custom_call.1} parent=31 // pred_check_branch
          %204 = sbr.rel (%p202) target = $region36
        $region35: #{tpu_custom_call.1} parent=31 // pred_region
          %205 = dma.done %s199, 16
        $region36: #{tpu_custom_call.1} parent=31 // pred_fallthru
          _
        %s206 = sand.u32 %s20, 1
        %s207 = scalar_lea.sflag [#allocation5], %s206
        %s208 = sand.u32 %s54, 1
        %s209 = smul.addr %s208, 4
        %s210 = scalar_lea.vmem [#allocation4], %s209
        // Predicated region
        $region37: #{tpu_custom_call.1} parent=31 // pred_check
          %p211 = pneg %p67
        $region38: #{tpu_custom_call.1} parent=31 // pred_check_branch
          %213 = sbr.rel (%p211) target = $region40
        $region39: #{tpu_custom_call.1} parent=31 // pred_region
          %214 = dma.done %s207, 64
        $region40: #{tpu_custom_call.1} parent=31 // pred_fallthru
          _
        %s215 = sand.u32 %s20, 1
        %s216 = scalar_lea.sflag [#allocation5], %s215
        %s217 = sand.u32 %s80, 1
        %s218 = smul.addr %s217, 4
        %s219 = scalar_lea.vmem [#allocation6], %s218
        // Predicated region
        $region41: #{tpu_custom_call.1} parent=31 // pred_check
          %p220 = pneg %p93
        $region42: #{tpu_custom_call.1} parent=31 // pred_check_branch
          %222 = sbr.rel (%p220) target = $region44
        $region43: #{tpu_custom_call.1} parent=31 // pred_region
          %223 = dma.done %s216, 64
        $region44: #{tpu_custom_call.1} parent=31 // pred_fallthru
          _
        %s224 = sand.u32 %s28, 1
        %s225 = scalar_lea.sflag [#allocation3], %s224
        %s226 = sand.u32 %s28, 1
        %s227 = scalar_lea.vmem [#allocation2], %s226
        %p228 = pneg %p41
        %p229 = pneg %p38
        %s230 = sand.u32 %s20, 1
        %s231 = scalar_lea.sflag [#allocation5], %s230
        %s232 = sand.u32 %s54, 1
        %s233 = smul.addr %s232, 4
        %s234 = scalar_lea.vmem [#allocation4], %s233
        %p235 = pneg %p67
        %p236 = pneg %p64
        %s237 = sand.u32 %s20, 1
        %s238 = scalar_lea.sflag [#allocation5], %s237
        %s239 = sand.u32 %s80, 1
        %s240 = smul.addr %s239, 4
        %s241 = scalar_lea.vmem [#allocation6], %s240
        %p242 = pneg %p93
        %p243 = pneg %p90
        %p244 = pneg %p119
        %p245 = pneg %p116
        %p246 = scmp.lt.s32.totalorder %s20, 1
        %s247 = scalar_select %p246, %s20, 1
        %s248 = scalar_lea.vmem %s3, %s247
        %p249 = scmp.lt.s32.totalorder %s20, 1
        %s250 = scalar_select %p249, %s20, 1
        %s251 = scalar_lea.vmem %s3, %s250
        %v252 = vld [vmem:[%s219] sm:$0xf]
        %v253 = vld [vmem:[%s210] sm:$0xf]
        %v254 = vld [vmem:[%s201] sm:$0x1]
        %v255 = vlog2.pop %v252
        %v256 = vmul.f32 %v255, 0.6931472
        %v257 = vmax.f32 %v256, -100.0
        %v258 = vsub.f32 1.0, %v252
        %v259 = vlog2.pop %v258
        %v260 = vmul.f32 %v259, 0.6931472
        %v261 = vmax.f32 %v260, -100.0
        %v262 = vmul.f32 %v253, %v257
        %v263 = vsub.f32 1.0, %v253
        %v264 = vmul.f32 %v263, %v261
        %v265 = vadd.f32 %v262, %v264
        %v266 = vsub.f32 0.0, %v265
        %v268 = vlaneseq
        %v269 = vshrl.u32 %v268, 7
        %v270 = vsub.s32 0, %v269
        %v271 = vrot.slane %v254, %v270
        %v273 = vmul.f32 %v266, %v271
        %vm274 = vcmask 60416
        %v275 = vsel %vm274, %v273, 0.0
        %276 = vadd.xlane.f32.xlu0 %v275
        %v277 = vpop.xlane.xlu0 %276
        %v278 = vrot.slane %v277, 4
        %v279 = vadd.f32 %v277, %v278
        %v280 = vrot.slane %v279, 2
        %v281 = vadd.f32 %v279, %v280
        %v282 = vrot.slane %v281, 1
        %v283 = vadd.f32 %v281, %v282
        %s284 = vtos %v283
        %v285 = vstv %s284
        %vm286 = vcmask 0
        %287 = vst.msk [vmem:[%s251] sm:$0x1] %vm286, %v285
        %p288 = scmp.lt.s32.totalorder %s20, 1
        %s289 = scalar_select %p288, %s20, 1
        %s290 = scalar_lea.vmem %s3, %s289
        // Predicated region
        $region45: #{tpu_custom_call.1} parent=31 // pred_check
          %p291 = pneg %p116
        $region46: #{tpu_custom_call.1} parent=31 // pred_check_branch
          %293 = sbr.rel (%p291) target = $region48
        $region47: #{tpu_custom_call.1} parent=31 // pred_region
          _
        $region48: #{tpu_custom_call.1} parent=31 // pred_fallthru
          _
      $region32: #{tpu_custom_call.1} parent=5 // pred_fallthru
        _
      %p294 = scmp.le.s32.totalorder 2, %s15
      // Predicated region
      $region49: #{tpu_custom_call.1} parent=5 // pred_check
        %p295 = pneg %p294
      $region50: #{tpu_custom_call.1} parent=5 // pred_check_branch
        %297 = sbr.rel (%p295) target = $region52
      $region51: #{tpu_custom_call.1} parent=5 // pred_region
        %s298 = ssub.s32 %s15, 2
        // Predicated region
        $region53: #{tpu_custom_call.1} parent=51 // pred_check
          %p299 = pneg %p122
        $region54: #{tpu_custom_call.1} parent=51 // pred_check_branch
          %301 = sbr.rel (%p299) target = $region56
        $region55: #{tpu_custom_call.1} parent=51 // pred_region
          %p302 = scmp.lt.s32.totalorder %s21, 1
          %s303 = scalar_select %p302, %s21, 1
          %s304 = scalar_lea.vmem %s3, %s303
        $region56: #{tpu_custom_call.1} parent=51 // pred_fallthru
          _
      $region52: #{tpu_custom_call.1} parent=5 // pred_fallthru
        _
    $region6: #{tpu_custom_call.1} parent=1 // loop_footer
      %s19 = sadd.s32 1, %s15
    $region7: #{tpu_custom_call.1} parent=1 // loop_footer_branch
      %14 = sbr.rel target = $region3
    $region8: #{tpu_custom_call.1} parent=1 // loop_exit
      _
    %305 = vsyncpa [#allocation3], 1
    %s306 = scalar_lea.sflag [#allocation3], 1
    %307 = vsyncpa %s306, 1
    %308 = vsyncpa [#allocation5], 1
    %s309 = scalar_lea.sflag [#allocation5], 1
    %310 = vsyncpa %s309, 1

</llo_original>
